<compile_context>
chip_gen: v7x
topology: tpu7x:2x2x1
jax: 0.10.0
libtpu: 0.0.40
codegen_flags: <defaults>
</compile_context>

<pallas_src>
import numpy as np
import jax
import jax.numpy as jnp
from jax import lax
from jax.experimental import pallas as pl
from jax.experimental.pallas import tpu as pltpu


def _round_up(n, m):
    return ((n + m - 1) // m) * m


# ----------------------------------------------------------------------------
# Kernel 1: VariancePredictor (duration predictor), time-on-lanes layout,
# BB batch rows folded along the lane axis per grid step.
# ----------------------------------------------------------------------------
def _conv_relu_ln_t(h, w, b, g, be, is_first, is_last):
    """Conv1d(k=3, pad=1) over time (lane axis) + bias, ReLU, LayerNorm over
    channels (sublane axis).

    h: (C, N) f32 with N = BB*Tp; w: (F, 3C) im2col weights;
    is_first/is_last: (1, N) bool masks marking t==0 / t==T-1 within each
    Tp-segment (conv zero padding + no cross-batch leakage)."""
    # shifted taps via XLU lane rolls + boundary masks
    left = jnp.where(is_first, 0.0, pltpu.roll(h, 1, axis=1))                 # x[t-1]
    right = jnp.where(is_last, 0.0, pltpu.roll(h, h.shape[1] - 1, axis=1))    # x[t+1]
    cat = jnp.concatenate([left, h, right], axis=0)                           # (3C, N) im2col
    y = jnp.dot(w, cat, preferred_element_type=jnp.float32) + b
    y = jnp.maximum(y, 0.0)                                                   # ReLU
    # single-pass LayerNorm over channels (eps = 1e-5): var = E[y^2] - mu^2
    mu = jnp.mean(y, axis=0, keepdims=True)
    ms = jnp.mean(y * y, axis=0, keepdims=True)
    var = jnp.maximum(ms - mu * mu, 0.0)
    return (y - mu) * lax.rsqrt(var + 1e-5) * g + be


def make_duration_predictor_kernel(t_true, tp):
    def kernel(x_ref, w1_ref, w2_ref, vec_ref, dp_ref):
        h = x_ref[0]                                               # (H, BB*Tp)
        n = h.shape[1]
        # per-segment time index, built once and reused by both layers
        col = lax.broadcasted_iota(jnp.int32, (1, n), 1) % tp
        is_first = col == 0
        is_last = col == (t_true - 1)
        v = vec_ref[...]                                           # (F, 8) packed params
        b1, g1, be1 = v[:, 0:1], v[:, 1:2], v[:, 2:3]
        b2, g2, be2 = v[:, 3:4], v[:, 4:5], v[:, 5:6]
        wl, bl = v[:, 6:7], v[0:1, 7:8]
        h = _conv_relu_ln_t(h, w1_ref[...], b1, g1, be1, is_first, is_last)
        h = _conv_relu_ln_t(h, w2_ref[...], b2, g2, be2, is_first, is_last)
        # Linear(F -> 1) as a sublane reduction; result stays lane-dense.
        dp = jnp.sum(h * wl, axis=0, keepdims=True) + bl           # (1, BB*Tp)
        dp_ref[0] = dp
    return kernel


def variance_predictor(x, p, bb=None):
    B, T, H = x.shape
    K, _, F = p["w1"].shape
    Tp = _round_up(T, 128)                          # lane-dense time axis

    # how many batch rows to fold along the lane axis per grid step
    if bb is None:
        bb = max(1, 512 // Tp)                      # target MXU N = bb*Tp >= 512
    bb = max(1, min(bb, B))

    def pred_bytes(bb_):                            # rough per-step VMEM footprint
        n = bb_ * Tp
        return 4 * (n * (2 * H + 3 * H + 3 * F + 2) + 2 * (F * 3 * H + F * 3 * F + 8 * F))

    while bb > 1 and pred_bytes(bb) > (24 << 20):   # conservative (v7x-safe) budget
        bb -= 1

    G = -(-B // bb)
    Bp = G * bb

    # TODO(synk): this transpose/pad/fold of x ((B,T,H) -> (G,H,bb*Tp)) is a
    # separate XLA HBM pass; produce x in (B,H,T) layout upstream (or fuse it
    # into the producer) to remove it.
    xT = jnp.pad(jnp.transpose(x, (0, 2, 1)), ((0, Bp - B), (0, 0), (0, Tp - T)))
    xF = xT.reshape(G, bb, H, Tp).transpose(0, 2, 1, 3).reshape(G, H, bb * Tp)

    # im2col'ed conv weights: W[f, k*C + c] = w[k, c, f]
    W1 = jnp.transpose(p["w1"], (2, 0, 1)).reshape(F, K * H)
    W2 = jnp.transpose(p["w2"], (2, 0, 1)).reshape(F, K * F)
    # pack the eight tiny per-layer vectors into one (F, 8) buffer
    vecs = jnp.concatenate(
        [p["b1"].reshape(F, 1), p["g1"].reshape(F, 1), p["be1"].reshape(F, 1),
         p["b2"].reshape(F, 1), p["g2"].reshape(F, 1), p["be2"].reshape(F, 1),
         p["wl"].reshape(F, 1), jnp.broadcast_to(p["bl"].reshape(1, 1), (F, 1))],
        axis=1)

    out = pl.pallas_call(
        make_duration_predictor_kernel(T, Tp),
        grid=(G,),
        in_specs=[
            pl.BlockSpec((1, H, bb * Tp), lambda g: (g, 0, 0)),   # x (folded, transposed, padded)
            pl.BlockSpec((F, K * H),      lambda g: (0, 0)),      # W1 (im2col)
            pl.BlockSpec((F, K * F),      lambda g: (0, 0)),      # W2 (im2col)
            pl.BlockSpec((F, 8),          lambda g: (0, 0)),      # packed bias/gamma/beta/wl/bl
        ],
        out_specs=pl.BlockSpec((1, 1, bb * Tp), lambda g: (g, 0, 0)),   # lane-dense dp
        out_shape=jax.ShapeDtypeStruct((G, 1, bb * Tp), jnp.float32),
        compiler_params=pltpu.CompilerParams(
            dimension_semantics=("parallel",),
            vmem_limit_bytes=int(min(max(2 * pred_bytes(bb), 32 << 20), 48 << 20))),
    )(xF, W1, W2, vecs)

    # unfold: (G, 1, bb*Tp) -> (B, T)
    return out.reshape(G, bb, Tp)[:, :, :T].reshape(G * bb, T)[:B]


# ----------------------------------------------------------------------------
# Kernel 2: Length regulation (alignment @ x), tiled over the frame axis,
# bf16 MXU operands (one-hot gather is exact up to bf16 rounding of x).
# ----------------------------------------------------------------------------
def length_regulator_kernel(start_ref, cum_ref, x_ref, out_ref):
    # start/cum: (1, 1, T) int32 exclusive/inclusive duration cumsums
    # x: (1, T, H) bf16; out: (1, TM, H) frame tile
    TM = out_ref.shape[1]
    T = x_ref.shape[1]
    m0 = pl.program_id(1) * TM
    frames = m0 + lax.broadcasted_iota(jnp.int32, (TM, T), 0)      # frame indices of this tile
    start = start_ref[0]                                           # (1, T)
    cum = cum_ref[0]                                               # (1, T)
    # one-hot alignment mask, built directly in the matmul dtype
    align = jnp.logical_and(frames >= start, frames < cum).astype(jnp.bfloat16)
    out_ref[0] = jnp.dot(align, x_ref[0],
                         preferred_element_type=jnp.float32).astype(out_ref.dtype)


def length_regulate(x, durations, mel_len, tm=None):
    B, T, H = x.shape
    dur = durations.astype(jnp.int32)
    cum = jnp.cumsum(dur, axis=-1)                  # cumsum computed outside the kernel
    start = (cum - dur).reshape(B, 1, T)
    cum = cum.reshape(B, 1, T)
    x_mxu = x.astype(jnp.bfloat16)                  # halves the x tile, 2-3x MXU rate

    if tm is None:
        tm = 1024                                   # big tile to amortize per-step overhead
    tm = min(tm, _round_up(mel_len, 8))

    def reg_bytes(tm_):                             # rough per-step VMEM footprint
        return (2 * T * H * 2 + 2 * tm_ * H * 4 + 4 * T * 4
                + tm_ * T * 8 + tm_ * H * 4)

    budget = 40 << 20                               # fits v7x's 64 MiB part with headroom
    while tm > 8 and reg_bytes(tm) > budget:
        tm = max(8, (tm // 2) // 8 * 8)

    Mp = _round_up(mel_len, tm)
    out = pl.pallas_call(
        length_regulator_kernel,
        grid=(B, Mp // tm),
        in_specs=[pl.BlockSpec((1, 1, T), lambda b, m: (b, 0, 0)),
                  pl.BlockSpec((1, 1, T), lambda b, m: (b, 0, 0)),
                  pl.BlockSpec((1, T, H), lambda b, m: (b, 0, 0))],
        out_specs=pl.BlockSpec((1, tm, H), lambda b, m: (b, m, 0)),
        out_shape=jax.ShapeDtypeStruct((B, Mp, H), x.dtype),
        compiler_params=pltpu.CompilerParams(
            dimension_semantics=("parallel", "parallel"),
            vmem_limit_bytes=int(min(max(2 * reg_bytes(tm), 32 << 20), 48 << 20))),
    )(start, cum, x_mxu)
    return out[:, :mel_len]


# ----------------------------------------------------------------------------
# LengthRegulator.forward
# ----------------------------------------------------------------------------
def length_regulator_forward(x, params, alpha=1.0, target=None, mel_max_length=None):
    dp = variance_predictor(x, params)                             # (B, T)
    if target is not None:
        if mel_max_length is not None:
            M = int(mel_max_length)
        else:
            M = max(int(jnp.max(jnp.sum(target, axis=-1))), 1)
        out = length_regulate(x, target, M)
        return out, dp
    else:
        # TODO(synk): the no-target branch has a data-dependent output length
        # (expand_max_len); it is resolved here with a host sync (eager only),
        # mirroring the original's .numpy() round-trip.
        dur = (jnp.maximum(jnp.round(jnp.exp(dp) - 1.0), 0.0) * alpha + 0.5
               ).astype(jnp.int32)
        M = max(int(jnp.max(jnp.sum(dur, axis=-1))), 1)
        out = length_regulate(x, dur, M)
        mel_pos = jnp.arange(1, out.shape[1] + 1, dtype=jnp.int32)[None, :]
        return out, mel_pos


# ----------------------------------------------------------------------------
# Plain-JAX / numpy references for validation
# ----------------------------------------------------------------------------
def ref_variance_predictor(x, p):
    def conv(h, w, b):
        T = h.shape[1]
        hp = jnp.pad(h, ((0, 0), (1, 1), (0, 0)))
        out = b
        for k in range(w.shape[0]):
            out = out + jnp.einsum("bth,hf->btf", hp[:, k:k + T, :], w[k])
        return out

    def ln(h, g, be):
        mu = jnp.mean(h, -1, keepdims=True)
        var = jnp.mean((h - mu) ** 2, -1, keepdims=True)
        return (h - mu) / jnp.sqrt(var + 1e-5) * g + be

    h = jax.nn.relu(conv(x, p["w1"], p["b1"]))
    h = ln(h, p["g1"], p["be1"])
    h = jax.nn.relu(conv(h, p["w2"], p["b2"]))
    h = ln(h, p["g2"], p["be2"])
    return (jnp.einsum("btf,fo->bto", h, p["wl"]) + p["bl"])[..., 0]


def ref_LR(x, dur, M):
    B, T, H = x.shape
    out = np.zeros((B, M, H), np.float32)
    for b in range(B):
        c = 0
        for t in range(T):
            for _ in range(int(dur[b, t])):
                if c >= M:                       # mirror the kernel's truncation
                    break
                out[b, c] = x[b, t]
                c += 1
    return out


# ----------------------------------------------------------------------------
if __name__ == "__main__":
    B, T, H, F, K = 2, 8, 32, 32, 3
    MEL_MAX = 24

    key = jax.random.PRNGKey(0)
    ks = jax.random.split(key, 12)
    params = {
        "w1": 0.1 * jax.random.normal(ks[0], (K, H, F), jnp.float32),
        "b1": 0.1 * jax.random.normal(ks[1], (1, F), jnp.float32),
        "g1": jnp.ones((1, F), jnp.float32) + 0.05 * jax.random.normal(ks[2], (1, F), jnp.float32),
        "be1": 0.05 * jax.random.normal(ks[3], (1, F), jnp.float32),
        "w2": 0.1 * jax.random.normal(ks[4], (K, F, F), jnp.float32),
        "b2": 0.1 * jax.random.normal(ks[5], (1, F), jnp.float32),
        "g2": jnp.ones((1, F), jnp.float32) + 0.05 * jax.random.normal(ks[6], (1, F), jnp.float32),
        "be2": 0.05 * jax.random.normal(ks[7], (1, F), jnp.float32),
        "wl": 0.1 * jax.random.normal(ks[8], (F, 1), jnp.float32),
        "bl": 0.1 * jax.random.normal(ks[9], (1, 1), jnp.float32),
    }
    x = jax.random.normal(ks[10], (B, T, H), jnp.float32)
    target = jax.random.randint(ks[11], (B, T), 0, 4).astype(jnp.int32)  # durations 0..3

    # training-mode forward: (expanded output, duration predictor logits)
    out, dp = length_regulator_forward(x, params, target=target, mel_max_length=MEL_MAX)
    out = jax.block_until_ready(out)
    dp = jax.block_until_ready(dp)

    # validate the duration predictor against the plain-JAX reference
    dp_ref = ref_variance_predictor(x, params)
    np.testing.assert_allclose(np.asarray(dp), np.asarray(dp_ref), rtol=2e-4, atol=2e-4)

    # validate the regulator: the one-hot gather with bf16 MXU operands is
    # exact up to bf16 rounding of x, so compare against a gather of bf16(x).
    x_bf16 = np.asarray(x.astype(jnp.bfloat16).astype(jnp.float32))
    out_ref = ref_LR(x_bf16, np.asarray(target), MEL_MAX)
    np.testing.assert_allclose(np.asarray(out), out_ref, rtol=1e-6, atol=1e-6)

    # inference-mode forward (predicted durations, data-dependent length): shape sanity only
    out2, mel_pos = length_regulator_forward(x, params, alpha=1.0)
    out2 = jax.block_until_ready(out2)
    assert out2.shape[0] == B and out2.shape[2] == H
    assert mel_pos.shape == (1, out2.shape[1])

    print("KERNEL_OK")
</pallas_src>

<mosaic_0001>
module attributes {stable_mosaic.version = 11 : i64} {
  func.func @kernel(%arg0: i32, %arg1: memref<1x32x256xf32, #tpu.memory_space<vmem>>, %arg2: memref<32x96xf32, #tpu.memory_space<vmem>>, %arg3: memref<32x96xf32, #tpu.memory_space<vmem>>, %arg4: memref<32x8xf32, #tpu.memory_space<vmem>>, %arg5: memref<1x1x256xf32, #tpu.memory_space<vmem>>) attributes {dimension_semantics = [#tpu.dimension_semantics<parallel>], iteration_bounds = array<i64: 1>, scalar_prefetch = 0 : i64, scratch_operands = 0 : i64, tpu.core_type = #tpu.core_type<tc>, window_params = [{transform_indices = @transform_0, window_bounds = array<i64: 1, 32, 256>}, {pipeline_mode = #tpu.pipeline_mode<synchronous>, transform_indices = @transform_1, window_bounds = array<i64: 32, 96>}, {pipeline_mode = #tpu.pipeline_mode<synchronous>, transform_indices = @transform_2, window_bounds = array<i64: 32, 96>}, {pipeline_mode = #tpu.pipeline_mode<synchronous>, transform_indices = @transform_3, window_bounds = array<i64: 32, 8>}, {transform_indices = @transform_4, window_bounds = array<i64: 1, 1, 256>}]} {
    %c0 = arith.constant 0 : index
    %c0_0 = arith.constant 0 : index
    %c0_1 = arith.constant 0 : index
    %0 = vector.load %arg1[%c0, %c0_0, %c0_1] : memref<1x32x256xf32, #tpu.memory_space<vmem>>, vector<1x32x256xf32>
    %1 = vector.shape_cast %0 : vector<1x32x256xf32> to vector<32x256xf32>
    %2 = tpu.iota {dimensions = array<i32: 1>} : vector<1x256xi32>
    %c128_i32 = arith.constant 128 : i32
    %c0_i32 = arith.constant 0 : i32
    %3 = arith.cmpi eq, %c128_i32, %c0_i32 : i32
    %c1_i32 = arith.constant 1 : i32
    %4 = arith.select %3, %c1_i32, %c128_i32 : i32
    %5 = vector.broadcast %4 : i32 to vector<1x256xi32>
    %6 = arith.remsi %2, %5 : vector<1x256xi32>
    %c0_i32_2 = arith.constant 0 : i32
    %7 = vector.broadcast %c0_i32_2 : i32 to vector<1x256xi32>
    %8 = arith.cmpi ne, %6, %7 : vector<1x256xi32>
    %c0_i32_3 = arith.constant 0 : i32
    %9 = vector.broadcast %c0_i32_3 : i32 to vector<1x256xi32>
    %10 = arith.cmpi slt, %6, %9 : vector<1x256xi32>
    %c0_i32_4 = arith.constant 0 : i32
    %11 = arith.cmpi slt, %4, %c0_i32_4 : i32
    %12 = vector.broadcast %11 : i1 to vector<1x256xi1>
    %13 = vector.broadcast %12 : vector<1x256xi1> to vector<1x256xi1>
    %14 = arith.xori %10, %13 : vector<1x256xi1>
    %15 = arith.andi %14, %8 : vector<1x256xi1>
    %16 = vector.broadcast %4 : i32 to vector<1x256xi32>
    %17 = arith.addi %6, %16 : vector<1x256xi32>
    %18 = arith.select %15, %17, %6 : vector<1x256xi1>, vector<1x256xi32>
    %c0_i32_5 = arith.constant 0 : i32
    %19 = vector.broadcast %c0_i32_5 : i32 to vector<1x256xi32>
    %20 = arith.cmpi eq, %18, %19 : vector<1x256xi32>
    %c7_i32 = arith.constant 7 : i32
    %21 = vector.broadcast %c7_i32 : i32 to vector<1x256xi32>
    %22 = arith.cmpi eq, %18, %21 : vector<1x256xi32>
    %c0_6 = arith.constant 0 : index
    %c0_7 = arith.constant 0 : index
    %23 = vector.load %arg4[%c0_6, %c0_7] : memref<32x8xf32, #tpu.memory_space<vmem>>, vector<32x8xf32>
    %24 = vector.extract_strided_slice %23 {offsets = [0, 0], sizes = [32, 1], strides = [1, 1]} : vector<32x8xf32> to vector<32x1xf32>
    %25 = vector.extract_strided_slice %23 {offsets = [0, 1], sizes = [32, 1], strides = [1, 1]} : vector<32x8xf32> to vector<32x1xf32>
    %26 = vector.extract_strided_slice %23 {offsets = [0, 2], sizes = [32, 1], strides = [1, 1]} : vector<32x8xf32> to vector<32x1xf32>
    %27 = vector.extract_strided_slice %23 {offsets = [0, 3], sizes = [32, 1], strides = [1, 1]} : vector<32x8xf32> to vector<32x1xf32>
    %28 = vector.extract_strided_slice %23 {offsets = [0, 4], sizes = [32, 1], strides = [1, 1]} : vector<32x8xf32> to vector<32x1xf32>
    %29 = vector.extract_strided_slice %23 {offsets = [0, 5], sizes = [32, 1], strides = [1, 1]} : vector<32x8xf32> to vector<32x1xf32>
    %30 = vector.extract_strided_slice %23 {offsets = [0, 6], sizes = [32, 1], strides = [1, 1]} : vector<32x8xf32> to vector<32x1xf32>
    %31 = vector.extract_strided_slice %23 {offsets = [0, 7], sizes = [1, 1], strides = [1, 1]} : vector<32x8xf32> to vector<1x1xf32>
    %c0_8 = arith.constant 0 : index
    %c0_9 = arith.constant 0 : index
    %32 = vector.load %arg2[%c0_8, %c0_9] : memref<32x96xf32, #tpu.memory_space<vmem>>, vector<32x96xf32>
    %c1_i32_10 = arith.constant 1 : i32
    %33 = tpu.dynamic_rotate %1 by %c1_i32_10 dim 1 : vector<32x256xf32>, i32 -> vector<32x256xf32>
    %cst = arith.constant 0.000000e+00 : f32
    %34 = vector.shape_cast %20 : vector<1x256xi1> to vector<1x256xi1>
    %35 = vector.broadcast %34 : vector<1x256xi1> to vector<32x256xi1>
    %36 = vector.broadcast %cst : f32 to vector<32x256xf32>
    %37 = arith.select %35, %36, %33 : vector<32x256xi1>, vector<32x256xf32>
    %c255_i32 = arith.constant 255 : i32
    %38 = tpu.dynamic_rotate %1 by %c255_i32 dim 1 : vector<32x256xf32>, i32 -> vector<32x256xf32>
    %cst_11 = arith.constant 0.000000e+00 : f32
    %39 = vector.shape_cast %22 : vector<1x256xi1> to vector<1x256xi1>
    %40 = vector.broadcast %39 : vector<1x256xi1> to vector<32x256xi1>
    %41 = vector.broadcast %cst_11 : f32 to vector<32x256xf32>
    %42 = arith.select %40, %41, %38 : vector<32x256xi1>, vector<32x256xf32>
    %43 = tpu.concatenate %37, %1, %42 in 0 : vector<32x256xf32>, vector<32x256xf32>, vector<32x256xf32> -> vector<96x256xf32>
    %cst_12 = arith.constant dense<0.000000e+00> : vector<32x256xf32>
    %44 = tpu.matmul %32, %43, %cst_12 {dimension_numbers = #tpu.dot_dimension_numbers<[1], [0], [0], [1], [0, 0, 1, 1], [], []>} : vector<32x96xf32>, vector<96x256xf32>, vector<32x256xf32> -> vector<32x256xf32>
    %45 = vector.broadcast %24 : vector<32x1xf32> to vector<32x256xf32>
    %46 = arith.addf %44, %45 : vector<32x256xf32>
    %cst_13 = arith.constant 0.000000e+00 : f32
    %47 = vector.broadcast %cst_13 : f32 to vector<32x256xf32>
    %48 = arith.maximumf %46, %47 : vector<32x256xf32>
    %cst_14 = arith.constant dense<0.000000e+00> : vector<256xf32>
    %49 = vector.multi_reduction <add>, %48, %cst_14 [0] : vector<32x256xf32> to vector<256xf32>
    %50 = vector.shape_cast %49 : vector<256xf32> to vector<1x256xf32>
    %cst_15 = arith.constant 3.200000e+01 : f32
    %51 = vector.broadcast %cst_15 : f32 to vector<1x256xf32>
    %52 = arith.divf %50, %51 : vector<1x256xf32>
    %53 = arith.mulf %48, %48 : vector<32x256xf32>
    %cst_16 = arith.constant dense<0.000000e+00> : vector<256xf32>
    %54 = vector.multi_reduction <add>, %53, %cst_16 [0] : vector<32x256xf32> to vector<256xf32>
    %55 = vector.shape_cast %54 : vector<256xf32> to vector<1x256xf32>
    %cst_17 = arith.constant 3.200000e+01 : f32
    %56 = vector.broadcast %cst_17 : f32 to vector<1x256xf32>
    %57 = arith.divf %55, %56 : vector<1x256xf32>
    %58 = arith.mulf %52, %52 : vector<1x256xf32>
    %59 = arith.subf %57, %58 : vector<1x256xf32>
    %cst_18 = arith.constant 0.000000e+00 : f32
    %60 = vector.broadcast %cst_18 : f32 to vector<1x256xf32>
    %61 = arith.maximumf %59, %60 : vector<1x256xf32>
    %62 = vector.broadcast %52 : vector<1x256xf32> to vector<32x256xf32>
    %63 = arith.subf %48, %62 : vector<32x256xf32>
    %cst_19 = arith.constant 9.99999974E-6 : f32
    %64 = vector.broadcast %cst_19 : f32 to vector<1x256xf32>
    %65 = arith.addf %61, %64 : vector<1x256xf32>
    %66 = math.rsqrt %65 : vector<1x256xf32>
    %67 = vector.broadcast %66 : vector<1x256xf32> to vector<32x256xf32>
    %68 = arith.mulf %63, %67 : vector<32x256xf32>
    %69 = vector.broadcast %25 : vector<32x1xf32> to vector<32x256xf32>
    %70 = arith.mulf %68, %69 : vector<32x256xf32>
    %71 = vector.broadcast %26 : vector<32x1xf32> to vector<32x256xf32>
    %72 = arith.addf %70, %71 : vector<32x256xf32>
    %c0_20 = arith.constant 0 : index
    %c0_21 = arith.constant 0 : index
    %73 = vector.load %arg3[%c0_20, %c0_21] : memref<32x96xf32, #tpu.memory_space<vmem>>, vector<32x96xf32>
    %c1_i32_22 = arith.constant 1 : i32
    %74 = tpu.dynamic_rotate %72 by %c1_i32_22 dim 1 : vector<32x256xf32>, i32 -> vector<32x256xf32>
    %cst_23 = arith.constant 0.000000e+00 : f32
    %75 = vector.shape_cast %20 : vector<1x256xi1> to vector<1x256xi1>
    %76 = vector.broadcast %75 : vector<1x256xi1> to vector<32x256xi1>
    %77 = vector.broadcast %cst_23 : f32 to vector<32x256xf32>
    %78 = arith.select %76, %77, %74 : vector<32x256xi1>, vector<32x256xf32>
    %c255_i32_24 = arith.constant 255 : i32
    %79 = tpu.dynamic_rotate %72 by %c255_i32_24 dim 1 : vector<32x256xf32>, i32 -> vector<32x256xf32>
    %cst_25 = arith.constant 0.000000e+00 : f32
    %80 = vector.shape_cast %22 : vector<1x256xi1> to vector<1x256xi1>
    %81 = vector.broadcast %80 : vector<1x256xi1> to vector<32x256xi1>
    %82 = vector.broadcast %cst_25 : f32 to vector<32x256xf32>
    %83 = arith.select %81, %82, %79 : vector<32x256xi1>, vector<32x256xf32>
    %84 = tpu.concatenate %78, %72, %83 in 0 : vector<32x256xf32>, vector<32x256xf32>, vector<32x256xf32> -> vector<96x256xf32>
    %cst_26 = arith.constant dense<0.000000e+00> : vector<32x256xf32>
    %85 = tpu.matmul %73, %84, %cst_26 {dimension_numbers = #tpu.dot_dimension_numbers<[1], [0], [0], [1], [0, 0, 1, 1], [], []>} : vector<32x96xf32>, vector<96x256xf32>, vector<32x256xf32> -> vector<32x256xf32>
    %86 = vector.broadcast %27 : vector<32x1xf32> to vector<32x256xf32>
    %87 = arith.addf %85, %86 : vector<32x256xf32>
    %cst_27 = arith.constant 0.000000e+00 : f32
    %88 = vector.broadcast %cst_27 : f32 to vector<32x256xf32>
    %89 = arith.maximumf %87, %88 : vector<32x256xf32>
    %cst_28 = arith.constant dense<0.000000e+00> : vector<256xf32>
    %90 = vector.multi_reduction <add>, %89, %cst_28 [0] : vector<32x256xf32> to vector<256xf32>
    %91 = vector.shape_cast %90 : vector<256xf32> to vector<1x256xf32>
    %cst_29 = arith.constant 3.200000e+01 : f32
    %92 = vector.broadcast %cst_29 : f32 to vector<1x256xf32>
    %93 = arith.divf %91, %92 : vector<1x256xf32>
    %94 = arith.mulf %89, %89 : vector<32x256xf32>
    %cst_30 = arith.constant dense<0.000000e+00> : vector<256xf32>
    %95 = vector.multi_reduction <add>, %94, %cst_30 [0] : vector<32x256xf32> to vector<256xf32>
    %96 = vector.shape_cast %95 : vector<256xf32> to vector<1x256xf32>
    %cst_31 = arith.constant 3.200000e+01 : f32
    %97 = vector.broadcast %cst_31 : f32 to vector<1x256xf32>
    %98 = arith.divf %96, %97 : vector<1x256xf32>
    %99 = arith.mulf %93, %93 : vector<1x256xf32>
    %100 = arith.subf %98, %99 : vector<1x256xf32>
    %cst_32 = arith.constant 0.000000e+00 : f32
    %101 = vector.broadcast %cst_32 : f32 to vector<1x256xf32>
    %102 = arith.maximumf %100, %101 : vector<1x256xf32>
    %103 = vector.broadcast %93 : vector<1x256xf32> to vector<32x256xf32>
    %104 = arith.subf %89, %103 : vector<32x256xf32>
    %cst_33 = arith.constant 9.99999974E-6 : f32
    %105 = vector.broadcast %cst_33 : f32 to vector<1x256xf32>
    %106 = arith.addf %102, %105 : vector<1x256xf32>
    %107 = math.rsqrt %106 : vector<1x256xf32>
    %108 = vector.broadcast %107 : vector<1x256xf32> to vector<32x256xf32>
    %109 = arith.mulf %104, %108 : vector<32x256xf32>
    %110 = vector.broadcast %28 : vector<32x1xf32> to vector<32x256xf32>
    %111 = arith.mulf %109, %110 : vector<32x256xf32>
    %112 = vector.broadcast %29 : vector<32x1xf32> to vector<32x256xf32>
    %113 = arith.addf %111, %112 : vector<32x256xf32>
    %114 = vector.broadcast %30 : vector<32x1xf32> to vector<32x256xf32>
    %115 = arith.mulf %113, %114 : vector<32x256xf32>
    %cst_34 = arith.constant dense<0.000000e+00> : vector<256xf32>
    %116 = vector.multi_reduction <add>, %115, %cst_34 [0] : vector<32x256xf32> to vector<256xf32>
    %117 = vector.shape_cast %116 : vector<256xf32> to vector<1x256xf32>
    %118 = vector.broadcast %31 : vector<1x1xf32> to vector<1x256xf32>
    %119 = arith.addf %117, %118 : vector<1x256xf32>
    %c0_35 = arith.constant 0 : index
    %c0_36 = arith.constant 0 : index
    %c0_37 = arith.constant 0 : index
    %120 = vector.load %arg5[%c0_35, %c0_36, %c0_37] : memref<1x1x256xf32, #tpu.memory_space<vmem>>, vector<1x1x256xf32>
    %121 = vector.shape_cast %120 : vector<1x1x256xf32> to vector<1x256xf32>
    %122 = vector.shape_cast %119 : vector<1x256xf32> to vector<1x1x256xf32>
    tpu.vector_store %arg5[%c0_35, %c0_36, %c0_37], %122 {strides = array<i32>} : memref<1x1x256xf32, #tpu.memory_space<vmem>>, vector<1x1x256xf32>,
    return
  }
  func.func @transform_0(%arg0: i32) -> (i32, i32, i32) {
    %c0_i32 = arith.constant 0 : i32
    %c0_i32_0 = arith.constant 0 : i32
    %c0_i32_1 = arith.constant 0 : i32
    return %arg0, %c0_i32, %c0_i32_0 : i32, i32, i32
  }
  func.func @transform_1(%arg0: i32) -> (i32, i32) {
    %c0_i32 = arith.constant 0 : i32
    %c0_i32_0 = arith.constant 0 : i32
    %c0_i32_1 = arith.constant 0 : i32
    return %c0_i32, %c0_i32_0 : i32, i32
  }
  func.func @transform_2(%arg0: i32) -> (i32, i32) {
    %c0_i32 = arith.constant 0 : i32
    %c0_i32_0 = arith.constant 0 : i32
    %c0_i32_1 = arith.constant 0 : i32
    return %c0_i32, %c0_i32_0 : i32, i32
  }
  func.func @transform_3(%arg0: i32) -> (i32, i32) {
    %c0_i32 = arith.constant 0 : i32
    %c0_i32_0 = arith.constant 0 : i32
    %c0_i32_1 = arith.constant 0 : i32
    return %c0_i32, %c0_i32_0 : i32, i32
  }
  func.func @transform_4(%arg0: i32) -> (i32, i32, i32) {
    %c0_i32 = arith.constant 0 : i32
    %c0_i32_0 = arith.constant 0 : i32
    %c0_i32_1 = arith.constant 0 : i32
    return %arg0, %c0_i32, %c0_i32_0 : i32, i32, i32
  }
}

</mosaic_0001>

<llo_original>
// kernel: tpu_custom_call.1
$region0: #{tpu_custom_call.1}
  #allocation0 [shape = 'u32[]', space=smem, size = 0x4, offset = 0x4, fixed_abs, tag = 'smem constant byte address 0x4 - core index']
  #allocation1 [shape = 'u32[144,128]{1,0:T(1,128)}', space=vmem, size = 0x12000, scoped, tag = 'internal scratch']
  %s0 = inlined_call_operand.hbm [shape: f32[1,32,256], index: 0, kind: input, shape index: {}]
  %s1 = inlined_call_operand.vmem [shape: f32[32,96], index: 1, kind: input, shape index: {}]
  %s2 = inlined_call_operand.hbm [shape: f32[32,96], index: 2, kind: input, shape index: {}]
  %s3 = inlined_call_operand.vmem [shape: f32[32,8], index: 3, kind: input, shape index: {}]
  %s4 = inlined_call_operand.hbm [shape: f32[1,1,256], index: 4, kind: output, shape index: {}]
  %s5 = sld [smem:[#allocation0]]
  $region34: #{tpu_custom_call.1} parent=0
    _
  %s7 = ssub.s32 1, %s5
  %s8 = scalar_select 0, %s7, %s5
  $region1: #{tpu_custom_call.1} parent=0
    #allocation2 [shape = 'u8[32768]{0}', space=vmem, size = 0x8000, scoped, tag = 'input window, operand 0, single buffered']
    #allocation3 [shape = 's32[1]{0}', space=sflag, size = 0x4, scoped, tag = 'scoped memory for tpu_custom_call.1']
    #allocation4 [shape = 's32[1]{0}', space=sflag, size = 0x4, scoped, tag = 'scoped memory for tpu_custom_call.1']
    #allocation5 [shape = 'u8[16384]{0}', space=vmem, size = 0x4000, scoped, tag = 'input window, operand 2, single buffered']
    #allocation6 [shape = 's32[1]{0}', space=sflag, size = 0x4, scoped, tag = 'scoped memory for tpu_custom_call.1']
    #allocation7 [shape = 'u8[1024]{0}', space=vmem, size = 0x400, scoped, tag = 'output window, operand 0, single buffered']
    %9 = vsyncpa [#allocation3], 0
    %10 = vsyncpa [#allocation6], 0
    %11 = vsyncpa [#allocation4], 0
    // Predicated region
    $region2: #{tpu_custom_call.1} parent=1 // pred_check
      _
    $region3: #{tpu_custom_call.1} parent=1 // pred_check_branch
      %13 = sbr.rel (0) target = $region5
    $region4: #{tpu_custom_call.1} parent=1 // pred_region
      %s15 = ssub.s32 1024, 1024
      %16 = vsyncadd [#allocation3], %s15
      %s17 = sshll.u32 [#allocation2], 4
      %s18 = int_to_ptr.vmem [resolvable:$true] %s17
      %23 = dma.hbm_to_vmem [thread:$0]  %s0, 1024, %s18, [#allocation3], 256, 256, 16
    $region5: #{tpu_custom_call.1} parent=1 // pred_fallthru
      _
    // Predicated region
    $region6: #{tpu_custom_call.1} parent=1 // pred_check
      _
    $region7: #{tpu_custom_call.1} parent=1 // pred_check_branch
      %25 = sbr.rel (0) target = $region9
    $region8: #{tpu_custom_call.1} parent=1 // pred_region
      _
    $region9: #{tpu_custom_call.1} parent=1 // pred_fallthru
      _
    // Predicated region
    $region10: #{tpu_custom_call.1} parent=1 // pred_check
      _
    $region11: #{tpu_custom_call.1} parent=1 // pred_check_branch
      %27 = sbr.rel (0) target = $region13
    $region12: #{tpu_custom_call.1} parent=1 // pred_region
      %s29 = ssub.s32 512, 512
      %30 = vsyncadd [#allocation6], %s29
      %s31 = sshll.u32 [#allocation5], 4
      %s32 = int_to_ptr.vmem [resolvable:$true] %s31
      %37 = dma.hbm_to_vmem [thread:$0]  %s2, 512, %s32, [#allocation6], 128, 128, 8
    $region13: #{tpu_custom_call.1} parent=1 // pred_fallthru
      _
    // Predicated region
    $region14: #{tpu_custom_call.1} parent=1 // pred_check
      _
    $region15: #{tpu_custom_call.1} parent=1 // pred_check_branch
      %39 = sbr.rel (0) target = $region17
    $region16: #{tpu_custom_call.1} parent=1 // pred_region
      _
    $region17: #{tpu_custom_call.1} parent=1 // pred_fallthru
      _
    // Predicated region
    $region18: #{tpu_custom_call.1} parent=1 // pred_check
      _
    $region19: #{tpu_custom_call.1} parent=1 // pred_check_branch
      %41 = sbr.rel (0) target = $region21
    $region20: #{tpu_custom_call.1} parent=1 // pred_region
      %42 = dma.done [#allocation3], 1024
    $region21: #{tpu_custom_call.1} parent=1 // pred_fallthru
      _
    // Predicated region
    $region22: #{tpu_custom_call.1} parent=1 // pred_check
      _
    $region23: #{tpu_custom_call.1} parent=1 // pred_check_branch
      %44 = sbr.rel (0) target = $region25
    $region24: #{tpu_custom_call.1} parent=1 // pred_region
      %45 = dma.done [#allocation6], 512
    $region25: #{tpu_custom_call.1} parent=1 // pred_fallthru
      _
    %v46 = vld [vmem:[#allocation2] sm:$0xff]
    %v47 = vld [vmem:[#allocation2 + $0x8] sm:$0xff]
    %v48 = vld [vmem:[#allocation2 + $0x10] sm:$0xff]
    %v49 = vld [vmem:[#allocation2 + $0x18] sm:$0xff]
    %v50 = vld [vmem:[#allocation2 + $0x20] sm:$0xff]
    %v51 = vld [vmem:[#allocation2 + $0x28] sm:$0xff]
    %v52 = vld [vmem:[#allocation2 + $0x30] sm:$0xff]
    %v53 = vld [vmem:[#allocation2 + $0x38] sm:$0xff]
    %v54 = vlaneseq
    %v55 = vand.u32 %v54, 127
    %v56 = vadd.s32 %v55, 128
    %vm57 = vcmp.lt.s32.totalorder %v55, 0
    %v58 = vsub.s32 0, %v55
    %v59 = vsel %vm57, %v58, %v55
    %v60 = vshrl.u32 %v59, 7
    %v61 = vand.u32 %v59, 127
    %v62 = vsub.s32 0, %v61
    %v63 = vsel %vm57, %v62, %v61
    %vm64 = vcmp.lt.s32.totalorder %v56, 0
    %v65 = vsub.s32 0, %v56
    %v66 = vsel %vm64, %v65, %v56
    %v67 = vshrl.u32 %v66, 7
    %v68 = vand.u32 %v66, 127
    %v69 = vsub.s32 0, %v68
    %v70 = vsel %vm64, %v69, %v68
    %vm71 = vcmp.ne.s32.totalorder %v63, 0
    %vm72 = vcmp.ne.s32.totalorder %v70, 0
    %vm73 = vcmp.lt.s32.totalorder %v63, 0
    %vm74 = vcmp.lt.s32.totalorder %v70, 0
    %vm75 = vmand %vm73, %vm71
    %vm76 = vmand %vm74, %vm72
    %v77 = vadd.s32 %v63, 128
    %v78 = vadd.s32 %v70, 128
    %v79 = vsel %vm75, %v77, %v63
    %v80 = vsel %vm76, %v78, %v70
    %vm81 = vcmp.eq.s32.totalorder %v79, 0
    %vm82 = vcmp.eq.s32.totalorder %v80, 0
    %vm83 = vcmp.eq.s32.totalorder %v79, 7
    %vm84 = vcmp.eq.s32.totalorder %v80, 7
    %v85 = vld [vmem:[%s3] sm:$0xff]
    %v86 = vld [vmem:[%s3 + $0x8] sm:$0xff]
    %v87 = vld [vmem:[%s3 + $0x10] sm:$0xff]
    %v88 = vld [vmem:[%s3 + $0x18] sm:$0xff]
    %v89 = vld [vmem:[%s1] sm:$0xff]
    %v90 = vld [vmem:[%s1 + $0x8] sm:$0xff]
    %v91 = vld [vmem:[%s1 + $0x10] sm:$0xff]
    %v92 = vld [vmem:[%s1 + $0x18] sm:$0xff]
    %93 = vrot.lane.b32.xlu0 %v46, 1
    %v94 = vpop.permute.xlu0 %93
    %95 = vrot.lane.b32.xlu0 %v48, 1
    %v96 = vpop.permute.xlu0 %95
    %97 = vrot.lane.b32.xlu0 %v50, 1
    %v98 = vpop.permute.xlu0 %97
    %99 = vrot.lane.b32.xlu0 %v52, 1
    %v100 = vpop.permute.xlu0 %99
    %101 = vrot.lane.b32.xlu0 %v47, 1
    %v102 = vpop.permute.xlu0 %101
    %103 = vrot.lane.b32.xlu0 %v49, 1
    %v104 = vpop.permute.xlu0 %103
    %105 = vrot.lane.b32.xlu0 %v51, 1
    %v106 = vpop.permute.xlu0 %105
    %107 = vrot.lane.b32.xlu0 %v53, 1
    %v108 = vpop.permute.xlu0 %107
    %vm109 = vcmp.lt.s32.totalorder %v55, 1
    %v110 = vsel %vm109, %v94, %v102
    %v111 = vsel %vm109, %v96, %v104
    %v112 = vsel %vm109, %v98, %v106
    %v113 = vsel %vm109, %v100, %v108
    %v114 = vsel %vm109, %v102, %v94
    %v115 = vsel %vm109, %v104, %v96
    %v116 = vsel %vm109, %v106, %v98
    %v117 = vsel %vm109, %v108, %v100
    %v118 = vsel %vm81, 1, 0
    %v119 = vsel %vm82, 1, 0
    %vm120 = vcmp.eq.s32.totalorder %v118, 1
    %vm121 = vcmp.eq.s32.totalorder %v119, 1
    %v122 = vsel %vm120, 0.0, %v114
    %v123 = vsel %vm121, 0.0, %v110
    %v124 = vsel %vm120, 0.0, %v115
    %v125 = vsel %vm121, 0.0, %v111
    %v126 = vsel %vm120, 0.0, %v116
    %v127 = vsel %vm121, 0.0, %v112
    %v128 = vsel %vm120, 0.0, %v117
    %v129 = vsel %vm121, 0.0, %v113
    %130 = vrot.lane.b32.xlu0 %v46, 127
    %v131 = vpop.permute.xlu0 %130
    %132 = vrot.lane.b32.xlu0 %v48, 127
    %v133 = vpop.permute.xlu0 %132
    %134 = vrot.lane.b32.xlu0 %v50, 127
    %v135 = vpop.permute.xlu0 %134
    %136 = vrot.lane.b32.xlu0 %v52, 127
    %v137 = vpop.permute.xlu0 %136
    %138 = vrot.lane.b32.xlu0 %v47, 127
    %v139 = vpop.permute.xlu0 %138
    %140 = vrot.lane.b32.xlu0 %v49, 127
    %v141 = vpop.permute.xlu0 %140
    %142 = vrot.lane.b32.xlu0 %v51, 127
    %v143 = vpop.permute.xlu0 %142
    %144 = vrot.lane.b32.xlu0 %v53, 127
    %v145 = vpop.permute.xlu0 %144
    %vm146 = vcmp.lt.s32.totalorder %v55, 127
    %v147 = vsel %vm146, %v131, %v139
    %v148 = vsel %vm146, %v133, %v141
    %v149 = vsel %vm146, %v135, %v143
    %v150 = vsel %vm146, %v137, %v145
    %v151 = vsel %vm146, %v139, %v131
    %v152 = vsel %vm146, %v141, %v133
    %v153 = vsel %vm146, %v143, %v135
    %v154 = vsel %vm146, %v145, %v137
    %v155 = vsel %vm83, 1, 0
    %v156 = vsel %vm84, 1, 0
    %vm157 = vcmp.eq.s32.totalorder %v155, 1
    %vm158 = vcmp.eq.s32.totalorder %v156, 1
    %v159 = vsel %vm157, 0.0, %v147
    %v160 = vsel %vm158, 0.0, %v151
    %v161 = vsel %vm157, 0.0, %v148
    %v162 = vsel %vm158, 0.0, %v152
    %v163 = vsel %vm157, 0.0, %v149
    %v164 = vsel %vm158, 0.0, %v153
    %v165 = vsel %vm157, 0.0, %v150
    %v166 = vsel %vm158, 0.0, %v154
    %168 = vset.pattern.permute.xlu0 0
    %169 = vperm.xlu0 %168, %v85
    %v170 = vpop.permute.xlu0 %169
    %173 = vset.pattern.permute.xlu0 0
    %174 = vperm.xlu0 %173, %v86
    %v175 = vpop.permute.xlu0 %174
    %178 = vset.pattern.permute.xlu0 0
    %179 = vperm.xlu0 %178, %v87
    %v180 = vpop.permute.xlu0 %179
    %183 = vset.pattern.permute.xlu0 0
    %184 = vperm.xlu0 %183, %v88
    %v185 = vpop.permute.xlu0 %184
    %vm187 = vcmask 785408
    %v189 = vsel %vm187, %v89, 0
    %v192 = vsel %vm187, %v90, 0
    %v195 = vsel %vm187, %v91, 0
    %v198 = vsel %vm187, %v92, 0
    %200 = vmatprep.subr.mxu0 %v123
    %201 = vmatpush1.msra.mxu0 %v122
    %202 = vmatprep.subr.mxu0 %v125
    %203 = vmatpush1.msra.mxu0 %v124
    %204 = vmatprep.subr.mxu0 %v127
    %205 = vmatpush1.msra.mxu0 %v126
    %206 = vmatprep.subr.mxu0 %v129
    %207 = vmatpush1.msra.mxu0 %v128
    %208 = vmatprep.subr.mxu0 %v47
    %209 = vmatpush1.msra.mxu0 %v46
    %210 = vmatprep.subr.mxu0 %v49
    %211 = vmatpush1.msra.mxu0 %v48
    %212 = vmatprep.subr.mxu0 %v51
    %213 = vmatpush1.msra.mxu0 %v50
    %214 = vmatprep.subr.mxu0 %v53
    %215 = vmatpush1.msra.mxu0 %v52
    %216 = vmatprep.subr.mxu0 %v160
    %217 = vmatpush1.msra.mxu0 %v159
    %218 = vmatprep.subr.mxu0 %v162
    %219 = vmatpush1.msra.mxu0 %v161
    %220 = vmatprep.subr.mxu0 %v164
    %221 = vmatpush1.msra.mxu0 %v163
    %222 = vmatprep.subr.mxu0 %v166
    %223 = vmatpush1.msra.mxu0 %v165
    %224 = vmatprep.subr.mxu0 0.0
    %225 = vmatpush1.msra.mxu0 0.0
    %226 = vmatprep.subr.mxu0 0.0
    %227 = vmatpush1.msra.mxu0 0.0
    %228 = vmatprep.subr.mxu0 0.0
    %229 = vmatpush1.msra.mxu0 0.0
    %230 = vmatprep.subr.mxu0 0.0
    %231 = vmatpush1.msra.mxu0 0.0
    %232 = vmatprep.subr.mxu0 0.0
    %233 = vmatpush1.msra.mxu0 0.0
    %234 = vmatprep.subr.mxu0 0.0
    %235 = vmatpush1.msra.mxu0 0.0
    %236 = vmatprep.subr.mxu0 0.0
    %237 = vmatpush1.msra.mxu0 0.0
    %238 = vmatprep.subr.mxu0 0.0
    %239 = vmatpush1.msra.mxu0 0.0
    %240 = vmatprep.subr.mxu0 0.0
    %241 = vmatpush1.msra.mxu0 0.0
    %242 = vmatprep.subr.mxu0 0.0
    %243 = vmatpush1.msra.mxu0 0.0
    %244 = vmatprep.subr.mxu0 0.0
    %245 = vmatpush1.msra.mxu0 0.0
    %246 = vmatprep.subr.mxu0 0.0
    %247 = vmatpush1.msra.mxu0 0.0
    %248 = vmatprep.subr.mxu0 0.0
    %249 = vmatpush1.msra.mxu0 0.0
    %250 = vmatprep.subr.mxu0 0.0
    %251 = vmatpush1.msra.mxu0 0.0
    %252 = vmatprep.subr.mxu0 0.0
    %253 = vmatpush1.msra.mxu0 0.0
    %254 = vmatprep.subr.mxu0 0.0
    %255 = vmatpush1.msra.mxu0 0.0
    %256 = vmatprep.subr.mxu0 0.0
    %257 = vmatpush1.msra.mxu0 0.0
    %258 = vmatprep.subr.mxu0 0.0
    %259 = vmatpush1.msra.mxu0 0.0
    %260 = vmatprep.subr.mxu0 0.0
    %261 = vmatpush1.msra.mxu0 0.0
    %262 = vmatprep.subr.mxu0 0.0
    %263 = vmatpush1.msra.mxu0 0.0
    %264 = vmatprep.mubr.f32.mxu0 0.0
    %265 = vmatmul.mubr.f32.gmra.mrb[0].mxu0 %v189
    %v266 = vpop.f32.mrb[0].mxu0
    %v267 = vadd.f32 %v170, %v266
    %v268 = vpop.f32.mrb[0].mxu0
    %v269 = vadd.f32 %v170, %v268
    %270 = vmatprep.mubr.f32.mxu0 0.0
    %271 = vmatmul.mubr.f32.gmra.mrb[0].mxu0 %v192
    %v272 = vpop.f32.mrb[0].mxu0
    %v273 = vadd.f32 %v175, %v272
    %v274 = vpop.f32.mrb[0].mxu0
    %v275 = vadd.f32 %v175, %v274
    %276 = vmatprep.mubr.f32.mxu0 0.0
    %277 = vmatmul.mubr.f32.gmra.mrb[0].mxu0 %v195
    %v278 = vpop.f32.mrb[0].mxu0
    %v279 = vadd.f32 %v180, %v278
    %v280 = vpop.f32.mrb[0].mxu0
    %v281 = vadd.f32 %v180, %v280
    %282 = vmatprep.mubr.f32.mxu0 0.0
    %283 = vmatmul.mubr.f32.gmra.mrb[0].mxu0 %v198
    %v284 = vpop.f32.mrb[0].mxu0
    %v285 = vadd.f32 %v185, %v284
    %v286 = vpop.f32.mrb[0].mxu0
    %v287 = vadd.f32 %v185, %v286
    %288 = vdwg.mxu0
    %v289 = vmax.f32 %v267, 0.0
    %v290 = vmax.f32 %v269, 0.0
    %v291 = vmax.f32 %v273, 0.0
    %v292 = vmax.f32 %v275, 0.0
    %v293 = vmax.f32 %v279, 0.0
    %v294 = vmax.f32 %v281, 0.0
    %v295 = vmax.f32 %v285, 0.0
    %v296 = vmax.f32 %v287, 0.0
    %v297 = vadd.f32 %v289, %v291
    %v298 = vadd.f32 %v297, %v293
    %v299 = vadd.f32 %v298, %v295
    %v300 = vrot.slane %v299, 4
    %v301 = vadd.f32 %v299, %v300
    %v302 = vrot.slane %v301, 2
    %v303 = vadd.f32 %v301, %v302
    %v304 = vrot.slane %v303, 1
    %v305 = vadd.f32 %v303, %v304
    %v306 = vadd.f32 %v290, %v292
    %v307 = vadd.f32 %v306, %v294
    %v308 = vadd.f32 %v307, %v296
    %v309 = vrot.slane %v308, 4
    %v310 = vadd.f32 %v308, %v309
    %v311 = vrot.slane %v310, 2
    %v312 = vadd.f32 %v310, %v311
    %v313 = vrot.slane %v312, 1
    %v314 = vadd.f32 %v312, %v313
    %v315 = vrcp.pop 32.0
    %v316 = vmul.f32 %v305, %v315
    %v317 = vmul.f32 %v314, %v315
    %v318 = vmul.f32 %v289, %v289
    %v319 = vmul.f32 %v290, %v290
    %v320 = vmul.f32 %v291, %v291
    %v321 = vmul.f32 %v292, %v292
    %v322 = vmul.f32 %v293, %v293
    %v323 = vmul.f32 %v294, %v294
    %v324 = vmul.f32 %v295, %v295
    %v325 = vmul.f32 %v296, %v296
    %v326 = vadd.f32 %v318, %v320
    %v327 = vadd.f32 %v326, %v322
    %v328 = vadd.f32 %v327, %v324
    %v329 = vrot.slane %v328, 4
    %v330 = vadd.f32 %v328, %v329
    %v331 = vrot.slane %v330, 2
    %v332 = vadd.f32 %v330, %v331
    %v333 = vrot.slane %v332, 1
    %v334 = vadd.f32 %v332, %v333
    %v335 = vadd.f32 %v319, %v321
    %v336 = vadd.f32 %v335, %v323
    %v337 = vadd.f32 %v336, %v325
    %v338 = vrot.slane %v337, 4
    %v339 = vadd.f32 %v337, %v338
    %v340 = vrot.slane %v339, 2
    %v341 = vadd.f32 %v339, %v340
    %v342 = vrot.slane %v341, 1
    %v343 = vadd.f32 %v341, %v342
    %v344 = vmul.f32 %v334, %v315
    %v345 = vmul.f32 %v343, %v315
    %v346 = vmul.f32 %v316, %v316
    %v347 = vmul.f32 %v317, %v317
    %v348 = vsub.f32 %v344, %v346
    %v349 = vsub.f32 %v345, %v347
    %v350 = vmax.f32 %v348, 0.0
    %v351 = vmax.f32 %v349, 0.0
    %v352 = vsub.f32 %v289, %v316
    %v353 = vsub.f32 %v290, %v317
    %v354 = vsub.f32 %v291, %v316
    %v355 = vsub.f32 %v292, %v317
    %v356 = vsub.f32 %v293, %v316
    %v357 = vsub.f32 %v294, %v317
    %v358 = vsub.f32 %v295, %v316
    %v359 = vsub.f32 %v296, %v317
    %v360 = vadd.f32 %v350, 1e-05
    %v361 = vadd.f32 %v351, 1e-05
    %v362 = vrsqrt.pop %v360
    %v363 = vrsqrt.pop %v361
    %v364 = vmul.f32 %v352, %v362
    %v365 = vmul.f32 %v353, %v363
    %v366 = vmul.f32 %v354, %v362
    %v367 = vmul.f32 %v355, %v363
    %v368 = vmul.f32 %v356, %v362
    %v369 = vmul.f32 %v357, %v363
    %v370 = vmul.f32 %v358, %v362
    %v371 = vmul.f32 %v359, %v363
    %372 = vset.pattern.permute.xlu0 1
    %373 = vperm.xlu0 %372, %v85
    %v374 = vpop.permute.xlu0 %373
    %376 = vset.pattern.permute.xlu0 1
    %377 = vperm.xlu0 %376, %v86
    %v378 = vpop.permute.xlu0 %377
    %380 = vset.pattern.permute.xlu0 1
    %381 = vperm.xlu0 %380, %v87
    %v382 = vpop.permute.xlu0 %381
    %384 = vset.pattern.permute.xlu0 1
    %385 = vperm.xlu0 %384, %v88
    %v386 = vpop.permute.xlu0 %385
    %v388 = vmul.f32 %v364, %v374
    %v389 = vmul.f32 %v365, %v374
    %v390 = vmul.f32 %v366, %v378
    %v391 = vmul.f32 %v367, %v378
    %v392 = vmul.f32 %v368, %v382
    %v393 = vmul.f32 %v369, %v382
    %v394 = vmul.f32 %v370, %v386
    %v395 = vmul.f32 %v371, %v386
    %396 = vset.pattern.permute.xlu0 2
    %397 = vperm.xlu0 %396, %v85
    %v398 = vpop.permute.xlu0 %397
    %400 = vset.pattern.permute.xlu0 2
    %401 = vperm.xlu0 %400, %v86
    %v402 = vpop.permute.xlu0 %401
    %404 = vset.pattern.permute.xlu0 2
    %405 = vperm.xlu0 %404, %v87
    %v406 = vpop.permute.xlu0 %405
    %408 = vset.pattern.permute.xlu0 2
    %409 = vperm.xlu0 %408, %v88
    %v410 = vpop.permute.xlu0 %409
    %v412 = vadd.f32 %v388, %v398
    %v413 = vadd.f32 %v389, %v398
    %v414 = vadd.f32 %v390, %v402
    %v415 = vadd.f32 %v391, %v402
    %v416 = vadd.f32 %v392, %v406
    %v417 = vadd.f32 %v393, %v406
    %v418 = vadd.f32 %v394, %v410
    %v419 = vadd.f32 %v395, %v410
    %v420 = vld [vmem:[#allocation5] sm:$0xff]
    %v421 = vld [vmem:[#allocation5 + $0x8] sm:$0xff]
    %v422 = vld [vmem:[#allocation5 + $0x10] sm:$0xff]
    %v423 = vld [vmem:[#allocation5 + $0x18] sm:$0xff]
    %424 = vrot.lane.b32.xlu0 %v412, 1
    %v425 = vpop.permute.xlu0 %424
    %426 = vrot.lane.b32.xlu0 %v414, 1
    %v427 = vpop.permute.xlu0 %426
    %428 = vrot.lane.b32.xlu0 %v416, 1
    %v429 = vpop.permute.xlu0 %428
    %430 = vrot.lane.b32.xlu0 %v418, 1
    %v431 = vpop.permute.xlu0 %430
    %432 = vrot.lane.b32.xlu0 %v413, 1
    %v433 = vpop.permute.xlu0 %432
    %434 = vrot.lane.b32.xlu0 %v415, 1
    %v435 = vpop.permute.xlu0 %434
    %436 = vrot.lane.b32.xlu0 %v417, 1
    %v437 = vpop.permute.xlu0 %436
    %438 = vrot.lane.b32.xlu0 %v419, 1
    %v439 = vpop.permute.xlu0 %438
    %v440 = vsel %vm109, %v425, %v433
    %v441 = vsel %vm109, %v427, %v435
    %v442 = vsel %vm109, %v429, %v437
    %v443 = vsel %vm109, %v431, %v439
    %v444 = vsel %vm109, %v433, %v425
    %v445 = vsel %vm109, %v435, %v427
    %v446 = vsel %vm109, %v437, %v429
    %v447 = vsel %vm109, %v439, %v431
    %v448 = vsel %vm120, 0.0, %v444
    %v449 = vsel %vm121, 0.0, %v440
    %v450 = vsel %vm120, 0.0, %v445
    %v451 = vsel %vm121, 0.0, %v441
    %v452 = vsel %vm120, 0.0, %v446
    %v453 = vsel %vm121, 0.0, %v442
    %v454 = vsel %vm120, 0.0, %v447
    %v455 = vsel %vm121, 0.0, %v443
    %456 = vrot.lane.b32.xlu0 %v412, 127
    %v457 = vpop.permute.xlu0 %456
    %458 = vrot.lane.b32.xlu0 %v414, 127
    %v459 = vpop.permute.xlu0 %458
    %460 = vrot.lane.b32.xlu0 %v416, 127
    %v461 = vpop.permute.xlu0 %460
    %462 = vrot.lane.b32.xlu0 %v418, 127
    %v463 = vpop.permute.xlu0 %462
    %464 = vrot.lane.b32.xlu0 %v413, 127
    %v465 = vpop.permute.xlu0 %464
    %466 = vrot.lane.b32.xlu0 %v415, 127
    %v467 = vpop.permute.xlu0 %466
    %468 = vrot.lane.b32.xlu0 %v417, 127
    %v469 = vpop.permute.xlu0 %468
    %470 = vrot.lane.b32.xlu0 %v419, 127
    %v471 = vpop.permute.xlu0 %470
    %v472 = vsel %vm146, %v457, %v465
    %v473 = vsel %vm146, %v459, %v467
    %v474 = vsel %vm146, %v461, %v469
    %v475 = vsel %vm146, %v463, %v471
    %v476 = vsel %vm146, %v465, %v457
    %v477 = vsel %vm146, %v467, %v459
    %v478 = vsel %vm146, %v469, %v461
    %v479 = vsel %vm146, %v471, %v463
    %v480 = vsel %vm157, 0.0, %v472
    %v481 = vsel %vm158, 0.0, %v476
    %v482 = vsel %vm157, 0.0, %v473
    %v483 = vsel %vm158, 0.0, %v477
    %v484 = vsel %vm157, 0.0, %v474
    %v485 = vsel %vm158, 0.0, %v478
    %v486 = vsel %vm157, 0.0, %v475
    %v487 = vsel %vm158, 0.0, %v479
    %488 = vset.pattern.permute.xlu0 3
    %489 = vperm.xlu0 %488, %v85
    %v490 = vpop.permute.xlu0 %489
    %492 = vset.pattern.permute.xlu0 3
    %493 = vperm.xlu0 %492, %v86
    %v494 = vpop.permute.xlu0 %493
    %496 = vset.pattern.permute.xlu0 3
    %497 = vperm.xlu0 %496, %v87
    %v498 = vpop.permute.xlu0 %497
    %500 = vset.pattern.permute.xlu0 3
    %501 = vperm.xlu0 %500, %v88
    %v502 = vpop.permute.xlu0 %501
    %v505 = vsel %vm187, %v420, 0
    %v508 = vsel %vm187, %v421, 0
    %v511 = vsel %vm187, %v422, 0
    %v514 = vsel %vm187, %v423, 0
    %516 = vmatprep.subr.mxu0 %v449
    %517 = vmatpush1.msra.mxu0 %v448
    %518 = vmatprep.subr.mxu0 %v451
    %519 = vmatpush1.msra.mxu0 %v450
    %520 = vmatprep.subr.mxu0 %v453
    %521 = vmatpush1.msra.mxu0 %v452
    %522 = vmatprep.subr.mxu0 %v455
    %523 = vmatpush1.msra.mxu0 %v454
    %524 = vmatprep.subr.mxu0 %v413
    %525 = vmatpush1.msra.mxu0 %v412
    %526 = vmatprep.subr.mxu0 %v415
    %527 = vmatpush1.msra.mxu0 %v414
    %528 = vmatprep.subr.mxu0 %v417
    %529 = vmatpush1.msra.mxu0 %v416
    %530 = vmatprep.subr.mxu0 %v419
    %531 = vmatpush1.msra.mxu0 %v418
    %532 = vmatprep.subr.mxu0 %v481
    %533 = vmatpush1.msra.mxu0 %v480
    %534 = vmatprep.subr.mxu0 %v483
    %535 = vmatpush1.msra.mxu0 %v482
    %536 = vmatprep.subr.mxu0 %v485
    %537 = vmatpush1.msra.mxu0 %v484
    %538 = vmatprep.subr.mxu0 %v487
    %539 = vmatpush1.msra.mxu0 %v486
    %540 = vmatprep.subr.mxu0 0.0
    %541 = vmatpush1.msra.mxu0 0.0
    %542 = vmatprep.subr.mxu0 0.0
    %543 = vmatpush1.msra.mxu0 0.0
    %544 = vmatprep.subr.mxu0 0.0
    %545 = vmatpush1.msra.mxu0 0.0
    %546 = vmatprep.subr.mxu0 0.0
    %547 = vmatpush1.msra.mxu0 0.0
    %548 = vmatprep.subr.mxu0 0.0
    %549 = vmatpush1.msra.mxu0 0.0
    %550 = vmatprep.subr.mxu0 0.0
    %551 = vmatpush1.msra.mxu0 0.0
    %552 = vmatprep.subr.mxu0 0.0
    %553 = vmatpush1.msra.mxu0 0.0
    %554 = vmatprep.subr.mxu0 0.0
    %555 = vmatpush1.msra.mxu0 0.0
    %556 = vmatprep.subr.mxu0 0.0
    %557 = vmatpush1.msra.mxu0 0.0
    %558 = vmatprep.subr.mxu0 0.0
    %559 = vmatpush1.msra.mxu0 0.0
    %560 = vmatprep.subr.mxu0 0.0
    %561 = vmatpush1.msra.mxu0 0.0
    %562 = vmatprep.subr.mxu0 0.0
    %563 = vmatpush1.msra.mxu0 0.0
    %564 = vmatprep.subr.mxu0 0.0
    %565 = vmatpush1.msra.mxu0 0.0
    %566 = vmatprep.subr.mxu0 0.0
    %567 = vmatpush1.msra.mxu0 0.0
    %568 = vmatprep.subr.mxu0 0.0
    %569 = vmatpush1.msra.mxu0 0.0
    %570 = vmatprep.subr.mxu0 0.0
    %571 = vmatpush1.msra.mxu0 0.0
    %572 = vmatprep.subr.mxu0 0.0
    %573 = vmatpush1.msra.mxu0 0.0
    %574 = vmatprep.subr.mxu0 0.0
    %575 = vmatpush1.msra.mxu0 0.0
    %576 = vmatprep.subr.mxu0 0.0
    %577 = vmatpush1.msra.mxu0 0.0
    %578 = vmatprep.subr.mxu0 0.0
    %579 = vmatpush1.msra.mxu0 0.0
    %580 = vmatprep.mubr.f32.mxu0 0.0
    %581 = vmatmul.mubr.f32.gmra.mrb[0].mxu0 %v505
    %v582 = vpop.f32.mrb[0].mxu0
    %v583 = vadd.f32 %v490, %v582
    %v584 = vpop.f32.mrb[0].mxu0
    %v585 = vadd.f32 %v490, %v584
    %586 = vmatprep.mubr.f32.mxu0 0.0
    %587 = vmatmul.mubr.f32.gmra.mrb[0].mxu0 %v508
    %v588 = vpop.f32.mrb[0].mxu0
    %v589 = vadd.f32 %v494, %v588
    %v590 = vpop.f32.mrb[0].mxu0
    %v591 = vadd.f32 %v494, %v590
    %592 = vmatprep.mubr.f32.mxu0 0.0
    %593 = vmatmul.mubr.f32.gmra.mrb[0].mxu0 %v511
    %v594 = vpop.f32.mrb[0].mxu0
    %v595 = vadd.f32 %v498, %v594
    %v596 = vpop.f32.mrb[0].mxu0
    %v597 = vadd.f32 %v498, %v596
    %598 = vmatprep.mubr.f32.mxu0 0.0
    %599 = vmatmul.mubr.f32.gmra.mrb[0].mxu0 %v514
    %v600 = vpop.f32.mrb[0].mxu0
    %v601 = vadd.f32 %v502, %v600
    %v602 = vpop.f32.mrb[0].mxu0
    %v603 = vadd.f32 %v502, %v602
    %604 = vdwg.mxu0
    %v605 = vmax.f32 %v583, 0.0
    %v606 = vmax.f32 %v585, 0.0
    %v607 = vmax.f32 %v589, 0.0
    %v608 = vmax.f32 %v591, 0.0
    %v609 = vmax.f32 %v595, 0.0
    %v610 = vmax.f32 %v597, 0.0
    %v611 = vmax.f32 %v601, 0.0
    %v612 = vmax.f32 %v603, 0.0
    %v613 = vadd.f32 %v605, %v607
    %v614 = vadd.f32 %v613, %v609
    %v615 = vadd.f32 %v614, %v611
    %v616 = vrot.slane %v615, 4
    %v617 = vadd.f32 %v615, %v616
    %v618 = vrot.slane %v617, 2
    %v619 = vadd.f32 %v617, %v618
    %v620 = vrot.slane %v619, 1
    %v621 = vadd.f32 %v619, %v620
    %v622 = vadd.f32 %v606, %v608
    %v623 = vadd.f32 %v622, %v610
    %v624 = vadd.f32 %v623, %v612
    %v625 = vrot.slane %v624, 4
    %v626 = vadd.f32 %v624, %v625
    %v627 = vrot.slane %v626, 2
    %v628 = vadd.f32 %v626, %v627
    %v629 = vrot.slane %v628, 1
    %v630 = vadd.f32 %v628, %v629
    %v631 = vmul.f32 %v621, %v315
    %v632 = vmul.f32 %v630, %v315
    %v633 = vmul.f32 %v605, %v605
    %v634 = vmul.f32 %v606, %v606
    %v635 = vmul.f32 %v607, %v607
    %v636 = vmul.f32 %v608, %v608
    %v637 = vmul.f32 %v609, %v609
    %v638 = vmul.f32 %v610, %v610
    %v639 = vmul.f32 %v611, %v611
    %v640 = vmul.f32 %v612, %v612
    %v641 = vadd.f32 %v633, %v635
    %v642 = vadd.f32 %v641, %v637
    %v643 = vadd.f32 %v642, %v639
    %v644 = vrot.slane %v643, 4
    %v645 = vadd.f32 %v643, %v644
    %v646 = vrot.slane %v645, 2
    %v647 = vadd.f32 %v645, %v646
    %v648 = vrot.slane %v647, 1
    %v649 = vadd.f32 %v647, %v648
    %v650 = vadd.f32 %v634, %v636
    %v651 = vadd.f32 %v650, %v638
    %v652 = vadd.f32 %v651, %v640
    %v653 = vrot.slane %v652, 4
    %v654 = vadd.f32 %v652, %v653
    %v655 = vrot.slane %v654, 2
    %v656 = vadd.f32 %v654, %v655
    %v657 = vrot.slane %v656, 1
    %v658 = vadd.f32 %v656, %v657
    %v659 = vmul.f32 %v649, %v315
    %v660 = vmul.f32 %v658, %v315
    %v661 = vmul.f32 %v631, %v631
    %v662 = vmul.f32 %v632, %v632
    %v663 = vsub.f32 %v659, %v661
    %v664 = vsub.f32 %v660, %v662
    %v665 = vmax.f32 %v663, 0.0
    %v666 = vmax.f32 %v664, 0.0
    %v667 = vsub.f32 %v605, %v631
    %v668 = vsub.f32 %v606, %v632
    %v669 = vsub.f32 %v607, %v631
    %v670 = vsub.f32 %v608, %v632
    %v671 = vsub.f32 %v609, %v631
    %v672 = vsub.f32 %v610, %v632
    %v673 = vsub.f32 %v611, %v631
    %v674 = vsub.f32 %v612, %v632
    %v675 = vadd.f32 %v665, 1e-05
    %v676 = vadd.f32 %v666, 1e-05
    %v677 = vrsqrt.pop %v675
    %v678 = vrsqrt.pop %v676
    %v679 = vmul.f32 %v667, %v677
    %v680 = vmul.f32 %v668, %v678
    %v681 = vmul.f32 %v669, %v677
    %v682 = vmul.f32 %v670, %v678
    %v683 = vmul.f32 %v671, %v677
    %v684 = vmul.f32 %v672, %v678
    %v685 = vmul.f32 %v673, %v677
    %v686 = vmul.f32 %v674, %v678
    %687 = vset.pattern.permute.xlu0 4
    %688 = vperm.xlu0 %687, %v85
    %v689 = vpop.permute.xlu0 %688
    %691 = vset.pattern.permute.xlu0 4
    %692 = vperm.xlu0 %691, %v86
    %v693 = vpop.permute.xlu0 %692
    %695 = vset.pattern.permute.xlu0 4
    %696 = vperm.xlu0 %695, %v87
    %v697 = vpop.permute.xlu0 %696
    %699 = vset.pattern.permute.xlu0 4
    %700 = vperm.xlu0 %699, %v88
    %v701 = vpop.permute.xlu0 %700
    %v703 = vmul.f32 %v679, %v689
    %v704 = vmul.f32 %v680, %v689
    %v705 = vmul.f32 %v681, %v693
    %v706 = vmul.f32 %v682, %v693
    %v707 = vmul.f32 %v683, %v697
    %v708 = vmul.f32 %v684, %v697
    %v709 = vmul.f32 %v685, %v701
    %v710 = vmul.f32 %v686, %v701
    %711 = vset.pattern.permute.xlu0 5
    %712 = vperm.xlu0 %711, %v85
    %v713 = vpop.permute.xlu0 %712
    %715 = vset.pattern.permute.xlu0 5
    %716 = vperm.xlu0 %715, %v86
    %v717 = vpop.permute.xlu0 %716
    %719 = vset.pattern.permute.xlu0 5
    %720 = vperm.xlu0 %719, %v87
    %v721 = vpop.permute.xlu0 %720
    %723 = vset.pattern.permute.xlu0 5
    %724 = vperm.xlu0 %723, %v88
    %v725 = vpop.permute.xlu0 %724
    %v727 = vadd.f32 %v703, %v713
    %v728 = vadd.f32 %v704, %v713
    %v729 = vadd.f32 %v705, %v717
    %v730 = vadd.f32 %v706, %v717
    %v731 = vadd.f32 %v707, %v721
    %v732 = vadd.f32 %v708, %v721
    %v733 = vadd.f32 %v709, %v725
    %v734 = vadd.f32 %v710, %v725
    %735 = vset.pattern.permute.xlu0 6
    %736 = vperm.xlu0 %735, %v85
    %v737 = vpop.permute.xlu0 %736
    %739 = vset.pattern.permute.xlu0 6
    %740 = vperm.xlu0 %739, %v86
    %v741 = vpop.permute.xlu0 %740
    %743 = vset.pattern.permute.xlu0 6
    %744 = vperm.xlu0 %743, %v87
    %v745 = vpop.permute.xlu0 %744
    %747 = vset.pattern.permute.xlu0 6
    %748 = vperm.xlu0 %747, %v88
    %v749 = vpop.permute.xlu0 %748
    %v751 = vmul.f32 %v727, %v737
    %v752 = vmul.f32 %v728, %v737
    %v753 = vmul.f32 %v729, %v741
    %v754 = vmul.f32 %v730, %v741
    %v755 = vmul.f32 %v731, %v745
    %v756 = vmul.f32 %v732, %v745
    %v757 = vmul.f32 %v733, %v749
    %v758 = vmul.f32 %v734, %v749
    %v759 = vadd.f32 %v751, %v753
    %v760 = vadd.f32 %v759, %v755
    %v761 = vadd.f32 %v760, %v757
    %v762 = vrot.slane %v761, 4
    %v763 = vadd.f32 %v761, %v762
    %v764 = vrot.slane %v763, 2
    %v765 = vadd.f32 %v763, %v764
    %v766 = vrot.slane %v765, 1
    %v767 = vadd.f32 %v765, %v766
    %v768 = vadd.f32 %v752, %v754
    %v769 = vadd.f32 %v768, %v756
    %v770 = vadd.f32 %v769, %v758
    %v771 = vrot.slane %v770, 4
    %v772 = vadd.f32 %v770, %v771
    %v773 = vrot.slane %v772, 2
    %v774 = vadd.f32 %v772, %v773
    %v775 = vrot.slane %v774, 1
    %v776 = vadd.f32 %v774, %v775
    %777 = vset.pattern.permute.xlu0 7
    %778 = vperm.xlu0 %777, %v85
    %v779 = vpop.permute.xlu0 %778
    %v781 = vadd.f32 %v767, %v779
    %v782 = vadd.f32 %v776, %v779
    %v785 = vcombine.low %v781, %v782
    %v787 = vunpack.c.l.s4 1966171168
    %v788 = vunpack.c.0.s8 %v787
    %v789 = vlaneseq
    %v790 = vshrl.u32 %v789, 7
    %v791 = vsub.s32 %v788, %v790
    %v792 = vrot.slane %v785, %v791
    %v794 = vunpack.c.l.s4 1966171168
    %v795 = vunpack.c.0.s8 %v794
    %v796 = vlaneseq
    %v797 = vshrl.u32 %v796, 7
    %v798 = vsub.s32 %v795, %v797
    %v799 = vrot.slane %v792, %v798
    %v801 = vlaneseq
    %vm802 = vcmp.ge.s32.totalorder %v801, 0
    %vm803 = vcmp.lt.s32.totalorder %v801, 256
    %vm804 = vmand %vm802, %vm803
    %805 = vst.msk [vmem:[#allocation7] sm:$0x3] %vm804, %v799
    // Predicated region
    $region26: #{tpu_custom_call.1} parent=1 // pred_check
      _
    $region27: #{tpu_custom_call.1} parent=1 // pred_check_branch
      %807 = sbr.rel (0) target = $region29
    $region28: #{tpu_custom_call.1} parent=1 // pred_region
      %s809 = ssub.s32 32, 32
      %810 = vsyncadd [#allocation4], %s809
      %s812 = sshll.u32 [#allocation7], 4
      %s813 = int_to_ptr.vmem [resolvable:$true] %s812
      %815 = dma.vmem_to_hbm [thread:$0]  %s813, 32, %s4, [#allocation4]
    $region29: #{tpu_custom_call.1} parent=1 // pred_fallthru
      _
    // Predicated region
    $region30: #{tpu_custom_call.1} parent=1 // pred_check
      _
    $region31: #{tpu_custom_call.1} parent=1 // pred_check_branch
      %817 = sbr.rel (0) target = $region33
    $region32: #{tpu_custom_call.1} parent=1 // pred_region
      %818 = dma.done [#allocation4], 32
    $region33: #{tpu_custom_call.1} parent=1 // pred_fallthru
      _
    %819 = vsyncpa [#allocation3], 1
    %820 = vsyncpa [#allocation6], 1
    %821 = vsyncpa [#allocation4], 1

</llo_original>
